<compile_context>
chip_gen: v5e
topology: v5e:2x2
jax: 0.10.0
libtpu: 0.0.40
codegen_flags: <defaults>
</compile_context>

<pallas_src>
import math

import jax
import jax.numpy as jnp
from jax.experimental import pallas as pl
from jax.experimental.pallas import tpu as pltpu


def _round_up(x, m):
    return ((x + m - 1) // m) * m


def _pick_tile(n128, max_tile):
    """Largest multiple of 128 that divides n128 and is <= max_tile."""
    t = 128
    c = 128
    while c <= min(max_tile, n128):
        if n128 % c == 0:
            t = c
        c += 128
    return t


# ----------------------------------------------------------------------------
# Pallas kernel: combined LANDER score (GNN score / density score), tiled
# per graph block.
#
# Streamed in a transposed orientation: grid = (graph, dst tile i, src tile j);
#   adjT[g, src, dst] tile (T, T)  keyed (g, j, i)      bf16
#   xn  [g, src, D]   tile (T, D)  keyed (g, j, 0)      bf16  (normalized feats)
#   xnT [g, D, dst]   tile (D, T)  keyed (g, 0, i)      bf16
#   xw  [g, src, 1]   tile (T, 1)  keyed (g, j, 0)      f32   (x @ w, per source)
#   bias (1, 1) in SMEM
#   out  score (G, 1, P) f32, (1, T) blocks keyed (g, 0, i) -> lane-dense stores
# ----------------------------------------------------------------------------
def _score_kernel(adjT_ref, xn_src_ref, xnT_dst_ref, xw_ref, b_ref,
                  score_ref, gnn_acc, num_acc, deg_acc):
    i = pl.program_id(1)          # destination-node tile within graph (parallel)
    j = pl.program_id(2)          # source-node tile within graph (reduction)

    @pl.when(j == 0)
    def _init():
        gnn_acc[...] = jnp.zeros_like(gnn_acc)
        num_acc[...] = jnp.zeros_like(num_acc)
        deg_acc[...] = jnp.zeros_like(deg_acc)

    a = adjT_ref[...].astype(jnp.float32)                      # (T, T): a[src, dst]
    # cosT[src, dst] = <xn[src], xn[dst]>   (bf16 MXU, f32 accumulation)
    cosT = jnp.dot(xn_src_ref[...], xnT_dst_ref[...],
                   preferred_element_type=jnp.float32)         # (T, T) f32
    xw = xw_ref[...]                                           # (T, 1) f32

    # GNN aggregation (GraphConv norm='none', self-loops as given) fused into
    # the same adj-tile pass as a VPU/XLU reduction: no width-1 MXU matmul.
    gnn_acc[...] += jnp.sum(a * xw, axis=0, keepdims=True)     # (1, T)
    # density numerator / in-degree (self-loops handled below)
    num_acc[...] += jnp.sum(a * cosT, axis=0, keepdims=True)   # (1, T)
    deg_acc[...] += jnp.sum(a, axis=0, keepdims=True)          # (1, T)

    # Self-loops only live on diagonal tiles (square tiles, same tiling on both
    # axes): subtract their contribution from the density reduction only.
    @pl.when(i == j)
    def _remove_self_loops():
        r = jax.lax.broadcasted_iota(jnp.int32, a.shape, 0)
        c = jax.lax.broadcasted_iota(jnp.int32, a.shape, 1)
        d = jnp.where(r == c, a, 0.0)                          # self-loop entries
        num_acc[...] -= jnp.sum(d * cosT, axis=0, keepdims=True)
        deg_acc[...] -= jnp.sum(d, axis=0, keepdims=True)

    @pl.when(j == pl.num_programs(2) - 1)
    def _finalize():
        b = b_ref[0, 0]
        gnn_sig = 1.0 / (1.0 + jnp.exp(-(gnn_acc[...] + b)))            # sigmoid
        density = num_acc[...] / jnp.maximum(deg_acc[...], 1.0)         # 0 if deg==0
        score_ref[...] = gnn_sig / (density + 1e-8)                     # (1, T)


def combined_score(adj, x, w, b, num_graphs, nodes_per_graph, *, tile_n=512):
    """Per-node combined LANDER score, shape (N,).

    adj[dst, src] must be a 0/1 dense block-diagonal in-adjacency of the
    batched graph (bf16 cast is lossless); equal-sized graphs.
    """
    n, d = x.shape
    g, npg = int(num_graphs), int(nodes_per_graph)
    assert n == g * npg, "equal-sized graphs expected"
    p = _round_up(max(npg, 1), 128)
    t = _pick_tile(p, max(tile_n, 128))

    adj = adj.astype(jnp.float32)
    x = x.astype(jnp.float32)

    # Only the G diagonal (npg x npg) blocks of the batched adjacency can hold
    # edges -> extract them with a strided gather (reads G*npg^2 elements, not
    # N^2) and run the kernel per graph block.
    gi = jnp.arange(g)
    adj_blk = adj.reshape(g, npg, g, npg)[gi, :, gi, :]          # (G, npg, npg) = adj[dst, src]
    x_blk = x.reshape(g, npg, d)
    if p != npg:
        adj_blk = jnp.pad(adj_blk, ((0, 0), (0, p - npg), (0, p - npg)))
        x_blk = jnp.pad(x_blk, ((0, 0), (0, p - npg), (0, 0)))

    # Layout plumbing (fused XLA passes): transposed bf16 adjacency, normalized
    # bf16 features (+ transpose), per-node x @ w.
    adjT_blk = jnp.swapaxes(adj_blk, 1, 2).astype(jnp.bfloat16)  # [g, src, dst]
    nrm = jnp.sqrt(jnp.sum(x_blk * x_blk, axis=-1, keepdims=True))
    xn = (x_blk / jnp.maximum(nrm, 1e-8)).astype(jnp.bfloat16)   # (G, P, D) bf16
    xnT = jnp.swapaxes(xn, 1, 2)                                 # (G, D, P) bf16
    xw = jnp.einsum('gpd,do->gpo', x_blk, w.astype(jnp.float32)) # (G, P, 1) f32
    b2 = jnp.asarray(b, jnp.float32).reshape(1, 1)

    nt = p // t
    out = pl.pallas_call(
        _score_kernel,
        out_shape=jax.ShapeDtypeStruct((g, 1, p), jnp.float32),
        grid=(g, nt, nt),
        in_specs=[
            pl.BlockSpec((None, t, t), lambda gg, i, j: (gg, j, i)),   # adjT tile
            pl.BlockSpec((None, t, d), lambda gg, i, j: (gg, j, 0)),   # xn  (src rows)
            pl.BlockSpec((None, d, t), lambda gg, i, j: (gg, 0, i)),   # xnT (dst cols)
            pl.BlockSpec((None, t, 1), lambda gg, i, j: (gg, j, 0)),   # x @ w (src)
            pl.BlockSpec(memory_space=pltpu.MemorySpace.SMEM),         # bias scalar
        ],
        out_specs=pl.BlockSpec((None, 1, t), lambda gg, i, j: (gg, 0, i)),  # lane-dense
        scratch_shapes=[pltpu.VMEM((1, t), jnp.float32),               # gnn
                        pltpu.VMEM((1, t), jnp.float32),               # num
                        pltpu.VMEM((1, t), jnp.float32)],              # deg
        compiler_params=pltpu.CompilerParams(
            dimension_semantics=("parallel", "parallel", "arbitrary"),
            vmem_limit_bytes=32 * 1024 * 1024,
        ),
    )(adjT_blk, xn, xnT, xw, b2)
    return out[:, 0, :npg].reshape(-1)


# ----------------------------------------------------------------------------
# Plain-JAX glue: per-graph top-k (models.utils.topk) for equal-sized graphs
# ----------------------------------------------------------------------------
def segment_topk_equal(score, ratio, num_graphs, nodes_per_graph):
    k = max(int(math.ceil(ratio * nodes_per_graph)), 1)
    s = score.reshape(num_graphs, nodes_per_graph)
    _, order = jax.lax.top_k(s, k)                              # descending per graph
    offsets = (jnp.arange(num_graphs) * nodes_per_graph)[:, None]
    perm = (order + offsets).reshape(-1)
    next_batch_num_nodes = jnp.full((num_graphs,), k, dtype=jnp.int32)
    return perm, next_batch_num_nodes


# ----------------------------------------------------------------------------
# LanderSAGPool module
# ----------------------------------------------------------------------------
class LanderSAGPoolPallas:
    def __init__(self, in_dim, ratio=0.5, tile_n=512, key=None):
        self.in_dim = in_dim
        self.ratio = ratio
        self.tile_n = tile_n
        key = jax.random.PRNGKey(1) if key is None else key
        # GraphConv(in_dim, 1) parameters, deterministic init.
        self.w = (jax.random.normal(key, (in_dim, 1), jnp.float32)
                  / jnp.sqrt(jnp.float32(in_dim)))
        self.b = jnp.zeros((1, 1), jnp.float32)

    def __call__(self, adj, x, num_graphs, nodes_per_graph):
        score = combined_score(adj, x, self.w, self.b,
                               num_graphs, nodes_per_graph, tile_n=self.tile_n)  # (N,)
        perm, next_bnn = segment_topk_equal(score, self.ratio,
                                            num_graphs, nodes_per_graph)

        # feature_transform (non_linearity = Identity): single fused XLA
        # gather*scale (no extra HBM round-trip / kernel launch).
        feat = x[perm] * score[perm][:, None]

        # Induced node-subgraph: K x K adjacency (instead of a masked N x N copy).
        sub_adj = jnp.take(jnp.take(adj, perm, axis=0), perm, axis=1)
        k = max(int(math.ceil(self.ratio * nodes_per_graph)), 1)
        # Batched graph is block-diagonal and perm keeps per-graph node blocks
        # contiguous, so per-graph surviving-edge counts are row-block sums.
        next_bne = (sub_adj.reshape(num_graphs, k, num_graphs * k)
                    .sum(axis=(1, 2)).astype(jnp.int32))
        # TODO(synk): dgl.node_subgraph / DGLGraph re-wiring (edge relabelling, EID
        # bookkeeping, set_batch_num_*, check_batch_validity) has no Pallas/JAX-array
        # equivalent; we return the induced K x K adjacency + batch counts instead.
        return sub_adj, feat, perm, next_bnn, next_bne


# ----------------------------------------------------------------------------
if __name__ == "__main__":
    key = jax.random.PRNGKey(0)
    num_graphs, nodes_per_graph, in_dim = 2, 192, 32       # per-graph pad 256 -> 2x2 tiles
    n_total = num_graphs * nodes_per_graph
    k_adj, k_ctr, k_noise = jax.random.split(key, 3)

    # Block-diagonal batched in-adjacency with self loops (edge src->dst at [dst, src]).
    blocks = (jax.random.uniform(
        k_adj, (num_graphs, nodes_per_graph, nodes_per_graph)) < 0.3).astype(jnp.float32)
    blocks = jnp.maximum(blocks, jnp.eye(nodes_per_graph, dtype=jnp.float32)[None])
    adj = jnp.zeros((n_total, n_total), jnp.float32)
    for g in range(num_graphs):
        s = g * nodes_per_graph
        adj = adj.at[s:s + nodes_per_graph, s:s + nodes_per_graph].set(blocks[g])

    # Clustered features (per-graph centre + noise) -> well-conditioned densities.
    centres = jax.random.normal(k_ctr, (num_graphs, in_dim), jnp.float32)
    x = (jnp.repeat(centres, nodes_per_graph, axis=0)
         + 0.5 * jax.random.normal(k_noise, (n_total, in_dim), jnp.float32))

    # tile_n=128 so this small demo exercises a multi-tile per-graph grid
    # (G=2, 2x2 tiles) with cross-tile accumulation and diagonal-tile self-loop
    # masking; production sizes should use the default tile_n=512.
    pool = LanderSAGPoolPallas(in_dim=in_dim, ratio=0.5, tile_n=128)
    sub_adj, feat, perm, next_bnn, next_bne = pool(adj, x, num_graphs, nodes_per_graph)
    jax.block_until_ready((sub_adj, feat, perm, next_bnn, next_bne))

    # --- correctness check of the Pallas score kernel vs plain JAX (same bf16
    #     rounding of the normalized features as the kernel's MXU feed) -------
    got = combined_score(adj, x, pool.w, pool.b, num_graphs, nodes_per_graph, tile_n=128)
    nrm = jnp.sqrt(jnp.sum(x * x, axis=-1, keepdims=True))
    xn = (x / jnp.maximum(nrm, 1e-8)).astype(jnp.bfloat16).astype(jnp.float32)
    cos = xn @ xn.T
    adj_ns = adj * (1.0 - jnp.eye(n_total, dtype=jnp.float32))
    deg = adj_ns.sum(-1)
    den = (adj_ns * cos).sum(-1) / jnp.maximum(deg, 1.0)
    xw = jnp.dot(x, pool.w)[:, 0]
    gnn = jnp.sum(adj * xw[None, :], axis=-1) + pool.b[0, 0]
    ref = jax.nn.sigmoid(gnn) / (den + 1e-8)
    assert bool(jnp.allclose(got, ref, rtol=2e-2, atol=1e-5)), \
        "score kernel mismatch vs plain-JAX reference"

    k = int(math.ceil(0.5 * nodes_per_graph))
    assert feat.shape == (num_graphs * k, in_dim)
    assert sub_adj.shape == (num_graphs * k, num_graphs * k)
    assert next_bnn.shape == (num_graphs,) and next_bne.shape == (num_graphs,)
    print("KERNEL_OK")
</pallas_src>

<mosaic_0001>
module attributes {stable_mosaic.version = 11 : i64} {
  func.func @_score_kernel(%arg0: i32, %arg1: i32, %arg2: i32, %arg3: memref<1x128x128xbf16, #tpu.memory_space<vmem>>, %arg4: memref<1x128x32xbf16, #tpu.memory_space<vmem>>, %arg5: memref<1x32x128xbf16, #tpu.memory_space<vmem>>, %arg6: memref<1x128x1xf32, #tpu.memory_space<vmem>>, %arg7: memref<1x1xf32, #tpu.memory_space<smem>>, %arg8: memref<1x1x128xf32, #tpu.memory_space<vmem>>, %arg9: memref<1x128xf32, #tpu.memory_space<vmem>>, %arg10: memref<1x128xf32, #tpu.memory_space<vmem>>, %arg11: memref<1x128xf32, #tpu.memory_space<vmem>>) attributes {dimension_semantics = [#tpu.dimension_semantics<parallel>, #tpu.dimension_semantics<parallel>, #tpu.dimension_semantics<arbitrary>], iteration_bounds = array<i64: 2, 2, 2>, scalar_prefetch = 0 : i64, scratch_operands = 3 : i64, tpu.core_type = #tpu.core_type<tc>, window_params = [{transform_indices = @transform_0, window_bounds = array<i64: 1, 128, 128>}, {transform_indices = @transform_1, window_bounds = array<i64: 1, 128, 32>}, {transform_indices = @transform_2, window_bounds = array<i64: 1, 32, 128>}, {transform_indices = @transform_3, window_bounds = array<i64: 1, 128, 1>}, {transform_indices = @transform_4, window_bounds = array<i64: 1, 1>}, {transform_indices = @transform_5, window_bounds = array<i64: 1, 1, 128>}]} {
    %c0_i32 = arith.constant 0 : i32
    %0 = arith.cmpi eq, %arg2, %c0_i32 : i32
    %1 = arith.extui %0 : i1 to i32
    %c0_i32_0 = arith.constant 0 : i32
    %2 = arith.cmpi ne, %1, %c0_i32_0 : i32
    scf.if %2 {
      %cst_29 = arith.constant 0.000000e+00 : f32
      %37 = vector.broadcast %cst_29 : f32 to vector<1x128xf32>
      %c0_30 = arith.constant 0 : index
      %c0_31 = arith.constant 0 : index
      %38 = vector.load %arg9[%c0_30, %c0_31] : memref<1x128xf32, #tpu.memory_space<vmem>>, vector<1x128xf32>
      tpu.vector_store %arg9[%c0_30, %c0_31], %37 {strides = array<i32>} : memref<1x128xf32, #tpu.memory_space<vmem>>, vector<1x128xf32>,
      %cst_32 = arith.constant 0.000000e+00 : f32
      %39 = vector.broadcast %cst_32 : f32 to vector<1x128xf32>
      %c0_33 = arith.constant 0 : index
      %c0_34 = arith.constant 0 : index
      %40 = vector.load %arg10[%c0_33, %c0_34] : memref<1x128xf32, #tpu.memory_space<vmem>>, vector<1x128xf32>
      tpu.vector_store %arg10[%c0_33, %c0_34], %39 {strides = array<i32>} : memref<1x128xf32, #tpu.memory_space<vmem>>, vector<1x128xf32>,
      %cst_35 = arith.constant 0.000000e+00 : f32
      %41 = vector.broadcast %cst_35 : f32 to vector<1x128xf32>
      %c0_36 = arith.constant 0 : index
      %c0_37 = arith.constant 0 : index
      %42 = vector.load %arg11[%c0_36, %c0_37] : memref<1x128xf32, #tpu.memory_space<vmem>>, vector<1x128xf32>
      tpu.vector_store %arg11[%c0_36, %c0_37], %41 {strides = array<i32>} : memref<1x128xf32, #tpu.memory_space<vmem>>, vector<1x128xf32>,
    } else {
    }
    %c0 = arith.constant 0 : index
    %c0_1 = arith.constant 0 : index
    %c0_2 = arith.constant 0 : index
    %3 = vector.load %arg3[%c0, %c0_1, %c0_2] : memref<1x128x128xbf16, #tpu.memory_space<vmem>>, vector<1x128x128xbf16>
    %4 = vector.shape_cast %3 : vector<1x128x128xbf16> to vector<128x128xbf16>
    %5 = arith.extf %4 : vector<128x128xbf16> to vector<128x128xf32>
    %c0_3 = arith.constant 0 : index
    %c0_4 = arith.constant 0 : index
    %c0_5 = arith.constant 0 : index
    %6 = vector.load %arg4[%c0_3, %c0_4, %c0_5] : memref<1x128x32xbf16, #tpu.memory_space<vmem>>, vector<1x128x32xbf16>
    %7 = vector.shape_cast %6 : vector<1x128x32xbf16> to vector<128x32xbf16>
    %c0_6 = arith.constant 0 : index
    %c0_7 = arith.constant 0 : index
    %c0_8 = arith.constant 0 : index
    %8 = vector.load %arg5[%c0_6, %c0_7, %c0_8] : memref<1x32x128xbf16, #tpu.memory_space<vmem>>, vector<1x32x128xbf16>
    %9 = vector.shape_cast %8 : vector<1x32x128xbf16> to vector<32x128xbf16>
    %cst = arith.constant dense<0.000000e+00> : vector<128x128xf32>
    %10 = tpu.matmul %7, %9, %cst {dimension_numbers = #tpu.dot_dimension_numbers<[1], [0], [0], [1], [0, 0, 1, 1], [], []>} : vector<128x32xbf16>, vector<32x128xbf16>, vector<128x128xf32> -> vector<128x128xf32>
    %c0_9 = arith.constant 0 : index
    %c0_10 = arith.constant 0 : index
    %c0_11 = arith.constant 0 : index
    %11 = vector.load %arg6[%c0_9, %c0_10, %c0_11] : memref<1x128x1xf32, #tpu.memory_space<vmem>>, vector<1x128x1xf32>
    %12 = vector.shape_cast %11 : vector<1x128x1xf32> to vector<128x1xf32>
    %c0_12 = arith.constant 0 : index
    %c0_13 = arith.constant 0 : index
    %13 = vector.load %arg9[%c0_12, %c0_13] : memref<1x128xf32, #tpu.memory_space<vmem>>, vector<1x128xf32>
    %14 = vector.broadcast %12 : vector<128x1xf32> to vector<128x128xf32>
    %15 = arith.mulf %5, %14 : vector<128x128xf32>
    %cst_14 = arith.constant dense<0.000000e+00> : vector<128xf32>
    %16 = vector.multi_reduction <add>, %15, %cst_14 [0] : vector<128x128xf32> to vector<128xf32>
    %17 = vector.shape_cast %16 : vector<128xf32> to vector<1x128xf32>
    %18 = arith.addf %13, %17 : vector<1x128xf32>
    %c0_15 = arith.constant 0 : index
    %c0_16 = arith.constant 0 : index
    %19 = vector.load %arg9[%c0_15, %c0_16] : memref<1x128xf32, #tpu.memory_space<vmem>>, vector<1x128xf32>
    tpu.vector_store %arg9[%c0_15, %c0_16], %18 {strides = array<i32>} : memref<1x128xf32, #tpu.memory_space<vmem>>, vector<1x128xf32>,
    %c0_17 = arith.constant 0 : index
    %c0_18 = arith.constant 0 : index
    %20 = vector.load %arg10[%c0_17, %c0_18] : memref<1x128xf32, #tpu.memory_space<vmem>>, vector<1x128xf32>
    %21 = arith.mulf %5, %10 : vector<128x128xf32>
    %cst_19 = arith.constant dense<0.000000e+00> : vector<128xf32>
    %22 = vector.multi_reduction <add>, %21, %cst_19 [0] : vector<128x128xf32> to vector<128xf32>
    %23 = vector.shape_cast %22 : vector<128xf32> to vector<1x128xf32>
    %24 = arith.addf %20, %23 : vector<1x128xf32>
    %c0_20 = arith.constant 0 : index
    %c0_21 = arith.constant 0 : index
    %25 = vector.load %arg10[%c0_20, %c0_21] : memref<1x128xf32, #tpu.memory_space<vmem>>, vector<1x128xf32>
    tpu.vector_store %arg10[%c0_20, %c0_21], %24 {strides = array<i32>} : memref<1x128xf32, #tpu.memory_space<vmem>>, vector<1x128xf32>,
    %c0_22 = arith.constant 0 : index
    %c0_23 = arith.constant 0 : index
    %26 = vector.load %arg11[%c0_22, %c0_23] : memref<1x128xf32, #tpu.memory_space<vmem>>, vector<1x128xf32>
    %cst_24 = arith.constant dense<0.000000e+00> : vector<128xf32>
    %27 = vector.multi_reduction <add>, %5, %cst_24 [0] : vector<128x128xf32> to vector<128xf32>
    %28 = vector.shape_cast %27 : vector<128xf32> to vector<1x128xf32>
    %29 = arith.addf %26, %28 : vector<1x128xf32>
    %c0_25 = arith.constant 0 : index
    %c0_26 = arith.constant 0 : index
    %30 = vector.load %arg11[%c0_25, %c0_26] : memref<1x128xf32, #tpu.memory_space<vmem>>, vector<1x128xf32>
    tpu.vector_store %arg11[%c0_25, %c0_26], %29 {strides = array<i32>} : memref<1x128xf32, #tpu.memory_space<vmem>>, vector<1x128xf32>,
    %31 = arith.cmpi eq, %arg1, %arg2 : i32
    %32 = arith.extui %31 : i1 to i32
    %c0_i32_27 = arith.constant 0 : i32
    %33 = arith.cmpi ne, %32, %c0_i32_27 : i32
    scf.if %33 {
      %37 = tpu.iota {dimensions = array<i32: 0>} : vector<128x128xi32>
      %38 = tpu.iota {dimensions = array<i32: 1>} : vector<128x128xi32>
      %39 = arith.cmpi eq, %37, %38 : vector<128x128xi32>
      %cst_29 = arith.constant 0.000000e+00 : f32
      %40 = vector.broadcast %cst_29 : f32 to vector<128x128xf32>
      %41 = arith.select %39, %5, %40 : vector<128x128xi1>, vector<128x128xf32>
      %c0_30 = arith.constant 0 : index
      %c0_31 = arith.constant 0 : index
      %42 = vector.load %arg10[%c0_30, %c0_31] : memref<1x128xf32, #tpu.memory_space<vmem>>, vector<1x128xf32>
      %43 = arith.mulf %41, %10 : vector<128x128xf32>
      %cst_32 = arith.constant dense<0.000000e+00> : vector<128xf32>
      %44 = vector.multi_reduction <add>, %43, %cst_32 [0] : vector<128x128xf32> to vector<128xf32>
      %45 = vector.shape_cast %44 : vector<128xf32> to vector<1x128xf32>
      %46 = arith.subf %42, %45 : vector<1x128xf32>
      %c0_33 = arith.constant 0 : index
      %c0_34 = arith.constant 0 : index
      %47 = vector.load %arg10[%c0_33, %c0_34] : memref<1x128xf32, #tpu.memory_space<vmem>>, vector<1x128xf32>
      tpu.vector_store %arg10[%c0_33, %c0_34], %46 {strides = array<i32>} : memref<1x128xf32, #tpu.memory_space<vmem>>, vector<1x128xf32>,
      %c0_35 = arith.constant 0 : index
      %c0_36 = arith.constant 0 : index
      %48 = vector.load %arg11[%c0_35, %c0_36] : memref<1x128xf32, #tpu.memory_space<vmem>>, vector<1x128xf32>
      %cst_37 = arith.constant dense<0.000000e+00> : vector<128xf32>
      %49 = vector.multi_reduction <add>, %41, %cst_37 [0] : vector<128x128xf32> to vector<128xf32>
      %50 = vector.shape_cast %49 : vector<128xf32> to vector<1x128xf32>
      %51 = arith.subf %48, %50 : vector<1x128xf32>
      %c0_38 = arith.constant 0 : index
      %c0_39 = arith.constant 0 : index
      %52 = vector.load %arg11[%c0_38, %c0_39] : memref<1x128xf32, #tpu.memory_space<vmem>>, vector<1x128xf32>
      tpu.vector_store %arg11[%c0_38, %c0_39], %51 {strides = array<i32>} : memref<1x128xf32, #tpu.memory_space<vmem>>, vector<1x128xf32>,
    } else {
    }
    %c1_i32 = arith.constant 1 : i32
    %34 = arith.cmpi eq, %arg2, %c1_i32 : i32
    %35 = arith.extui %34 : i1 to i32
    %c0_i32_28 = arith.constant 0 : i32
    %36 = arith.cmpi ne, %35, %c0_i32_28 : i32
    scf.if %36 {
      %c0_29 = arith.constant 0 : index
      %c0_30 = arith.constant 0 : index
      %37 = memref.load %arg7[%c0_29, %c0_30] : memref<1x1xf32, #tpu.memory_space<smem>>
      %c0_31 = arith.constant 0 : index
      %c0_32 = arith.constant 0 : index
      %38 = vector.load %arg9[%c0_31, %c0_32] : memref<1x128xf32, #tpu.memory_space<vmem>>, vector<1x128xf32>
      %39 = vector.broadcast %37 : f32 to vector<1x128xf32>
      %40 = arith.addf %38, %39 : vector<1x128xf32>
      %cst_33 = arith.constant 0.000000e+00 : f32
      %41 = vector.broadcast %cst_33 : f32 to vector<1x128xf32>
      %42 = arith.subf %41, %40 : vector<1x128xf32>
      %43 = math.exp %42 : vector<1x128xf32>
      %cst_34 = arith.constant 1.000000e+00 : f32
      %44 = vector.broadcast %cst_34 : f32 to vector<1x128xf32>
      %45 = arith.addf %44, %43 : vector<1x128xf32>
      %cst_35 = arith.constant 1.000000e+00 : f32
      %46 = vector.broadcast %cst_35 : f32 to vector<1x128xf32>
      %47 = arith.divf %46, %45 : vector<1x128xf32>
      %c0_36 = arith.constant 0 : index
      %c0_37 = arith.constant 0 : index
      %48 = vector.load %arg10[%c0_36, %c0_37] : memref<1x128xf32, #tpu.memory_space<vmem>>, vector<1x128xf32>
      %c0_38 = arith.constant 0 : index
      %c0_39 = arith.constant 0 : index
      %49 = vector.load %arg11[%c0_38, %c0_39] : memref<1x128xf32, #tpu.memory_space<vmem>>, vector<1x128xf32>
      %cst_40 = arith.constant 1.000000e+00 : f32
      %50 = vector.broadcast %cst_40 : f32 to vector<1x128xf32>
      %51 = arith.maximumf %49, %50 : vector<1x128xf32>
      %52 = arith.divf %48, %51 : vector<1x128xf32>
      %cst_41 = arith.constant 9.99999993E-9 : f32
      %53 = vector.broadcast %cst_41 : f32 to vector<1x128xf32>
      %54 = arith.addf %52, %53 : vector<1x128xf32>
      %55 = arith.divf %47, %54 : vector<1x128xf32>
      %c0_42 = arith.constant 0 : index
      %c0_43 = arith.constant 0 : index
      %c0_44 = arith.constant 0 : index
      %56 = vector.load %arg8[%c0_42, %c0_43, %c0_44] : memref<1x1x128xf32, #tpu.memory_space<vmem>>, vector<1x1x128xf32>
      %57 = vector.shape_cast %56 : vector<1x1x128xf32> to vector<1x128xf32>
      %58 = vector.shape_cast %55 : vector<1x128xf32> to vector<1x1x128xf32>
      tpu.vector_store %arg8[%c0_42, %c0_43, %c0_44], %58 {strides = array<i32>} : memref<1x1x128xf32, #tpu.memory_space<vmem>>, vector<1x1x128xf32>,
    } else {
    }
    return
  }
  func.func @transform_0(%arg0: i32, %arg1: i32, %arg2: i32) -> (i32, i32, i32) {
    %c0_i32 = arith.constant 0 : i32
    return %arg0, %arg2, %arg1 : i32, i32, i32
  }
  func.func @transform_1(%arg0: i32, %arg1: i32, %arg2: i32) -> (i32, i32, i32) {
    %c0_i32 = arith.constant 0 : i32
    %c0_i32_0 = arith.constant 0 : i32
    return %arg0, %arg2, %c0_i32 : i32, i32, i32
  }
  func.func @transform_2(%arg0: i32, %arg1: i32, %arg2: i32) -> (i32, i32, i32) {
    %c0_i32 = arith.constant 0 : i32
    %c0_i32_0 = arith.constant 0 : i32
    return %arg0, %c0_i32, %arg1 : i32, i32, i32
  }
  func.func @transform_3(%arg0: i32, %arg1: i32, %arg2: i32) -> (i32, i32, i32) {
    %c0_i32 = arith.constant 0 : i32
    %c0_i32_0 = arith.constant 0 : i32
    return %arg0, %arg2, %c0_i32 : i32, i32, i32
  }
  func.func @transform_4(%arg0: i32, %arg1: i32, %arg2: i32) -> (i32, i32) {
    %c0_i32 = arith.constant 0 : i32
    %c0_i32_0 = arith.constant 0 : i32
    %c0_i32_1 = arith.constant 0 : i32
    return %c0_i32, %c0_i32_0 : i32, i32
  }
  func.func @transform_5(%arg0: i32, %arg1: i32, %arg2: i32) -> (i32, i32, i32) {
    %c0_i32 = arith.constant 0 : i32
    %c0_i32_0 = arith.constant 0 : i32
    return %arg0, %c0_i32, %arg1 : i32, i32, i32
  }
}

</mosaic_0001>

<llo_original>
// kernel: tpu_custom_call.1
$region0: #{tpu_custom_call.1}
  #allocation0 [shape = 'u32[]', space=smem, size = 0x4, offset = 0x4, fixed_abs, tag = 'smem constant byte address 0x4 - core index']
  #allocation1 [shape = 'u32[72,128]{1,0:T(1,128)}', space=vmem, size = 0x9000, scoped, tag = 'internal scratch']
  #allocation2 [shape = 'f32[1,128]{1,0:T(1,128)}', space=vmem, size = 0x200, scoped, tag = 'scratch operand']
  #allocation3 [shape = 'f32[1,128]{1,0:T(1,128)}', space=vmem, size = 0x200, scoped, tag = 'scratch operand']
  #allocation4 [shape = 'f32[1,128]{1,0:T(1,128)}', space=vmem, size = 0x200, scoped, tag = 'scratch operand']
  #allocation5 [shape = 'f32[1,1]{1,0:T(1,128)S(6)}', space=smem, size = 0x200, scoped, tag = 'scoped memory for tpu_custom_call.1']
  %s0 = inlined_call_operand.vmem [shape: bf16[2,256,256], index: 0, kind: input, shape index: {}]
  %s1 = inlined_call_operand.vmem [shape: bf16[2,256,32], index: 1, kind: input, shape index: {}]
  %s2 = inlined_call_operand.vmem [shape: bf16[2,32,256], index: 2, kind: input, shape index: {}]
  %s3 = inlined_call_operand.vmem [shape: f32[2,256,1], index: 3, kind: input, shape index: {}]
  %s4 = inlined_call_operand.<no memory space> [shape: f32[1,1], index: 4, kind: input, shape index: {}]
  %s5 = inlined_call_operand.hbm [shape: f32[2,1,256], index: 5, kind: output, shape index: {}]
  %s6 = sld [smem:[#allocation0]]
  $region147: #{tpu_custom_call.1} parent=0
    _
  %s8 = ssub.s32 1, %s6
  %s9 = scalar_select 0, %s8, %s6
  %10 = sst [smem:[#allocation5]] %s4
  $region1: #{tpu_custom_call.1} parent=0
    #allocation6 [shape = 'u8[65536]{0}', space=vmem, size = 0x10000, scoped, tag = 'input window, operand 0']
    #allocation7 [shape = 'u8[16384]{0}', space=vmem, size = 0x4000, scoped, tag = 'input window, operand 2']
    #allocation8 [shape = 'u8[1024]{0}', space=vmem, size = 0x400, scoped, tag = 'output window, operand 0']
    #allocation9 [shape = 's32[2]{0}', space=sflag, size = 0x8, scoped, tag = 'scoped memory for tpu_custom_call.1']
    %11 = vsyncpa [#allocation9], 0
    %s12 = scalar_lea.sflag [#allocation9], 1
    %13 = vsyncpa %s12, 0
    loop: start=0, step=1, limit=10
    $region2: #{tpu_custom_call.1} parent=1 // loop_pre_header
      _
    $region3: #{tpu_custom_call.1} parent=1 // loop_header
      %s15 = sphi 0, %s19
      %p16 = scmp.ge.s32.totalorder %s15, 10
      %s22 = sphi 0, %s41
      %s23 = sphi 0, %s37
      %s24 = sphi 0, %s33
      %s25 = sphi 0, %s22
      %s26 = sphi 0, %s23
      %s27 = sphi 0, %s24
      %s28 = sphi 0, %s25
      %s29 = sphi 0, %s26
      %s30 = sphi 0, %s27
      %s48 = sphi 0, %s50
      %s51 = sphi 0, %s48
      %s52 = sphi 0, %s51
      %s68 = sphi 0, %s52
      %s76 = sphi 0, %s78
      %s79 = sphi 0, %s76
      %s80 = sphi 0, %s79
      %s96 = sphi 0, %s80
      %s104 = sphi 0, %s106
      %s107 = sphi 0, %s104
      %s108 = sphi 0, %s107
      %s124 = sphi 0, %s108
      %s132 = sphi 0, %s134
      %s135 = sphi 0, %s132
      %s136 = sphi 0, %s135
      %s152 = sphi 0, %s136
      %s156 = sphi 0, %s156
      %s158 = sphi 0, %s156
      %s159 = sphi 0, %s158
      %s173 = sphi 0, %s159
      %s181 = sphi 0, %s183
      %s184 = sphi 0, %s181
      %s185 = sphi 0, %s184
      %s201 = sphi 0, %s185
    $region4: #{tpu_custom_call.1} parent=1 // loop_header_branch
      %18 = sbr.rel (%p16) target = $region8
    $region5: #{tpu_custom_call.1} parent=1 // loop_body
      %s20 = ssub.s32 %s15, 1
      %s21 = ssub.s32 %s15, 2
      %s31 = sadd.s32 1, %s24
      %p32 = scmp.ge.s32.totalorder %s31, 2
      %s33 = scalar_select %p32, 0, %s31
      %s34 = sadd.s32 1, %s23
      %s35 = scalar_select %p32, %s34, %s23
      %p36 = scmp.ge.s32.totalorder %s35, 2
      %s37 = scalar_select %p36, 0, %s35
      %s38 = sadd.s32 1, %s22
      %s39 = scalar_select %p36, %s38, %s22
      %p40 = scmp.ge.s32.totalorder %s39, 2
      %s41 = scalar_select %p40, 0, %s39
      %s42 = ssub.s32 %s22, %s41
      %s43 = ssub.s32 %s24, %s33
      %s44 = sor.u32 %s42, %s43
      %s45 = ssub.s32 %s23, %s37
      %s46 = sor.u32 %s44, %s45
      %p47 = scmp.eq.s32.totalorder %s46, 0
      %s49 = sadd.s32 %s48, 1
      %s50 = scalar_select %p47, %s48, %s49
      %p53 = pneg %p47
      %p54 = scmp.eq.s32.totalorder %s15, 7
      %p55 = por %p53, %p54
      %p56 = scmp.ne.s32.totalorder %s48, %s51
      %p57 = scmp.eq.s32.totalorder %s15, 0
      %p58 = por %p56, %p57
      %p59 = scmp.ne.s32.totalorder %s48, %s51
      %p60 = scmp.eq.s32.totalorder %s20, 7
      %p61 = por %p59, %p60
      %p62 = scmp.ne.s32.totalorder %s51, %s52
      %p63 = scmp.eq.s32.totalorder %s20, 0
      %p64 = por %p62, %p63
      %p65 = scmp.ne.s32.totalorder %s51, %s52
      %p66 = scmp.eq.s32.totalorder %s21, 7
      %p67 = por %p65, %p66
      %p69 = scmp.ne.s32.totalorder %s52, %s68
      %p70 = scmp.eq.s32.totalorder %s21, 0
      %p71 = por %p69, %p70
      %s72 = ssub.s32 %s22, %s41
      %s73 = ssub.s32 %s24, %s33
      %s74 = sor.u32 %s72, %s73
      %p75 = scmp.eq.s32.totalorder %s74, 0
      %s77 = sadd.s32 %s76, 1
      %s78 = scalar_select %p75, %s76, %s77
      %p81 = pneg %p75
      %p82 = scmp.eq.s32.totalorder %s15, 7
      %p83 = por %p81, %p82
      %p84 = scmp.ne.s32.totalorder %s76, %s79
      %p85 = scmp.eq.s32.totalorder %s15, 0
      %p86 = por %p84, %p85
      %p87 = scmp.ne.s32.totalorder %s76, %s79
      %p88 = scmp.eq.s32.totalorder %s20, 7
      %p89 = por %p87, %p88
      %p90 = scmp.ne.s32.totalorder %s79, %s80
      %p91 = scmp.eq.s32.totalorder %s20, 0
      %p92 = por %p90, %p91
      %p93 = scmp.ne.s32.totalorder %s79, %s80
      %p94 = scmp.eq.s32.totalorder %s21, 7
      %p95 = por %p93, %p94
      %p97 = scmp.ne.s32.totalorder %s80, %s96
      %p98 = scmp.eq.s32.totalorder %s21, 0
      %p99 = por %p97, %p98
      %s100 = ssub.s32 %s22, %s41
      %s101 = ssub.s32 %s23, %s37
      %s102 = sor.u32 %s100, %s101
      %p103 = scmp.eq.s32.totalorder %s102, 0
      %s105 = sadd.s32 %s104, 1
      %s106 = scalar_select %p103, %s104, %s105
      %p109 = pneg %p103
      %p110 = scmp.eq.s32.totalorder %s15, 7
      %p111 = por %p109, %p110
      %p112 = scmp.ne.s32.totalorder %s104, %s107
      %p113 = scmp.eq.s32.totalorder %s15, 0
      %p114 = por %p112, %p113
      %p115 = scmp.ne.s32.totalorder %s104, %s107
      %p116 = scmp.eq.s32.totalorder %s20, 7
      %p117 = por %p115, %p116
      %p118 = scmp.ne.s32.totalorder %s107, %s108
      %p119 = scmp.eq.s32.totalorder %s20, 0
      %p120 = por %p118, %p119
      %p121 = scmp.ne.s32.totalorder %s107, %s108
      %p122 = scmp.eq.s32.totalorder %s21, 7
      %p123 = por %p121, %p122
      %p125 = scmp.ne.s32.totalorder %s108, %s124
      %p126 = scmp.eq.s32.totalorder %s21, 0
      %p127 = por %p125, %p126
      %s128 = ssub.s32 %s22, %s41
      %s129 = ssub.s32 %s24, %s33
      %s130 = sor.u32 %s128, %s129
      %p131 = scmp.eq.s32.totalorder %s130, 0
      %s133 = sadd.s32 %s132, 1
      %s134 = scalar_select %p131, %s132, %s133
      %p137 = pneg %p131
      %p138 = scmp.eq.s32.totalorder %s15, 7
      %p139 = por %p137, %p138
      %p140 = scmp.ne.s32.totalorder %s132, %s135
      %p141 = scmp.eq.s32.totalorder %s15, 0
      %p142 = por %p140, %p141
      %p143 = scmp.ne.s32.totalorder %s132, %s135
      %p144 = scmp.eq.s32.totalorder %s20, 7
      %p145 = por %p143, %p144
      %p146 = scmp.ne.s32.totalorder %s135, %s136
      %p147 = scmp.eq.s32.totalorder %s20, 0
      %p148 = por %p146, %p147
      %p149 = scmp.ne.s32.totalorder %s135, %s136
      %p150 = scmp.eq.s32.totalorder %s21, 7
      %p151 = por %p149, %p150
      %p153 = scmp.ne.s32.totalorder %s136, %s152
      %p154 = scmp.eq.s32.totalorder %s21, 0
      %p155 = por %p153, %p154
      %s157 = sadd.s32 %s156, 1
      %p160 = scmp.eq.s32.totalorder %s15, 7
      %p161 = scmp.ne.s32.totalorder %s156, %s158
      %p162 = scmp.eq.s32.totalorder %s15, 0
      %p163 = por %p161, %p162
      %p164 = scmp.ne.s32.totalorder %s156, %s158
      %p165 = scmp.eq.s32.totalorder %s20, 7
      %p166 = por %p164, %p165
      %p167 = scmp.ne.s32.totalorder %s158, %s159
      %p168 = scmp.eq.s32.totalorder %s20, 0
      %p169 = por %p167, %p168
      %p170 = scmp.ne.s32.totalorder %s158, %s159
      %p171 = scmp.eq.s32.totalorder %s21, 7
      %p172 = por %p170, %p171
      %p174 = scmp.ne.s32.totalorder %s159, %s173
      %p175 = scmp.eq.s32.totalorder %s21, 0
      %p176 = por %p174, %p175
      %s177 = ssub.s32 %s22, %s41
      %s178 = ssub.s32 %s23, %s37
      %s179 = sor.u32 %s177, %s178
      %p180 = scmp.eq.s32.totalorder %s179, 0
      %s182 = sadd.s32 %s181, 1
      %s183 = scalar_select %p180, %s181, %s182
      %p186 = pneg %p180
      %p187 = scmp.eq.s32.totalorder %s15, 7
      %p188 = por %p186, %p187
      %p189 = scmp.ne.s32.totalorder %s181, %s184
      %p190 = scmp.eq.s32.totalorder %s15, 0
      %p191 = por %p189, %p190
      %p192 = scmp.ne.s32.totalorder %s181, %s184
      %p193 = scmp.eq.s32.totalorder %s20, 7
      %p194 = por %p192, %p193
      %p195 = scmp.ne.s32.totalorder %s184, %s185
      %p196 = scmp.eq.s32.totalorder %s20, 0
      %p197 = por %p195, %p196
      %p198 = scmp.ne.s32.totalorder %s184, %s185
      %p199 = scmp.eq.s32.totalorder %s21, 7
      %p200 = por %p198, %p199
      %p202 = scmp.ne.s32.totalorder %s185, %s201
      %p203 = scmp.eq.s32.totalorder %s21, 0
      %p204 = por %p202, %p203
      %p205 = scmp.le.s32.totalorder 1, %s15
      %p206 = scmp.lt.s32.totalorder %s15, 9
      %p207 = pnand %p205, %p206
      %p208 = pneg %p207
      // Predicated region
      $region9: #{tpu_custom_call.1} parent=5 // pred_check
        _
      $region10: #{tpu_custom_call.1} parent=5 // pred_check_branch
        %210 = sbr.rel (%p207) target = $region12
      $region11: #{tpu_custom_call.1} parent=5 // pred_region
        %s211 = ssub.s32 %s15, 1
        // Predicated region
        $region13: #{tpu_custom_call.1} parent=11 // pred_check
          %p212 = pneg %p169
        $region14: #{tpu_custom_call.1} parent=11 // pred_check_branch
          %214 = sbr.rel (%p212) target = $region16
        $region15: #{tpu_custom_call.1} parent=11 // pred_region
          _
        $region16: #{tpu_custom_call.1} parent=11 // pred_fallthru
          _
      $region12: #{tpu_custom_call.1} parent=5 // pred_fallthru
        _
      %p215 = scmp.lt.s32.totalorder %s15, 8
      // Predicated region
      $region17: #{tpu_custom_call.1} parent=5 // pred_check
        %p216 = pneg %p215
      $region18: #{tpu_custom_call.1} parent=5 // pred_check_branch
        %218 = sbr.rel (%p216) target = $region20
      $region19: #{tpu_custom_call.1} parent=5 // pred_region
        // Predicated region
        $region21: #{tpu_custom_call.1} parent=19 // pred_check
          %p219 = pneg %p58
        $region22: #{tpu_custom_call.1} parent=19 // pred_check_branch
          %221 = sbr.rel (%p219) target = $region24
        $region23: #{tpu_custom_call.1} parent=19 // pred_region
          %s222 = sand.u32 %s48, 1
          %s223 = sand.u32 %s48, 1
          %s224 = smul.addr %s223, 64
          %s225 = scalar_lea.vmem [#allocation6], %s224
          %s226 = smul.u32 16, %s24
          %s227 = smul.addr %s226, 2
          %s228 = sadd.s32 %s23, %s227
          %s229 = smul.addr %s22, 64
          %s230 = sadd.s32 %s228, %s229
          %s231 = smul.addr %s230, 4
          %s232 = scalar_lea.vmem %s0, %s231
          // Predicated region
          $region25: #{tpu_custom_call.1} parent=23 // pred_check
            _
          $region26: #{tpu_custom_call.1} parent=23 // pred_check_branch
            %234 = sbr.rel (0) target = $region28
          $region27: #{tpu_custom_call.1} parent=23 // pred_region
            // Predicated region
            $region29: #{tpu_custom_call.1} parent=27 // pred_check
              _
            $region30: #{tpu_custom_call.1} parent=27 // pred_check_branch
              %236 = sbr.rel target = $region32
            $region31: #{tpu_custom_call.1} parent=27 // pred_region
              // Predicated region
              $region44: #{tpu_custom_call.1} parent=31 // pred_check
                _
              $region45: #{tpu_custom_call.1} parent=31 // pred_check_branch
                %282 = sbr.rel (0) target = $region47
              $region46: #{tpu_custom_call.1} parent=31 // pred_region
                loop: start=0, step=1, limit=1
                $region48: #{tpu_custom_call.1} parent=46 // loop_pre_header
                  _
                $region49: #{tpu_custom_call.1} parent=46 // loop_header
                  %s284 = sphi 0, %s288
                  %p285 = scmp.ge.s32.totalorder %s284, 1
                  %s289 = sphi %s232, %s232
                  %s290 = sphi %s225, %s225
                $region50: #{tpu_custom_call.1} parent=46 // loop_header_branch
                  %287 = sbr.rel (%p285) target = $region54
                $region51: #{tpu_custom_call.1} parent=46 // loop_body
                  _
                $region52: #{tpu_custom_call.1} parent=46 // loop_footer
                  %s288 = sadd.s32 1, %s284
                $region53: #{tpu_custom_call.1} parent=46 // loop_footer_branch
                  %283 = sbr.rel target = $region49
                $region54: #{tpu_custom_call.1} parent=46 // loop_exit
                  _
                %s292 = ssub.s32 16, 1
                loop: start=0, step=1, limit=1
                $region55: #{tpu_custom_call.1} parent=46 // loop_pre_header
                  _
                $region56: #{tpu_custom_call.1} parent=46 // loop_header
                  %s294 = sphi 0, %s298
                  %p295 = scmp.ge.s32.totalorder %s294, 1
                  %s299 = sphi %s232, %s232
                  %s300 = sphi %s225, %s225
                $region57: #{tpu_custom_call.1} parent=46 // loop_header_branch
                  %297 = sbr.rel (%p295) target = $region61
                $region58: #{tpu_custom_call.1} parent=46 // loop_body
                  %v301 = vld [vmem:[%s299] sm:%s292]
                  %302 = vst [vmem:[%s300] sm:%s292] %v301
                  %v303 = vld [vmem:[%s299 + $0x8] sm:%s292]
                  %304 = vst [vmem:[%s300 + $0x4] sm:%s292] %v303
                  %v305 = vld [vmem:[%s299 + $0x10] sm:%s292]
                  %306 = vst [vmem:[%s300 + $0x8] sm:%s292] %v305
                  %v307 = vld [vmem:[%s299 + $0x18] sm:%s292]
                  %308 = vst [vmem:[%s300 + $0xc] sm:%s292] %v307
                  %v309 = vld [vmem:[%s299 + $0x20] sm:%s292]
                  %310 = vst [vmem:[%s300 + $0x10] sm:%s292] %v309
                  %v311 = vld [vmem:[%s299 + $0x28] sm:%s292]
                  %312 = vst [vmem:[%s300 + $0x14] sm:%s292] %v311
                  %v313 = vld [vmem:[%s299 + $0x30] sm:%s292]
                  %314 = vst [vmem:[%s300 + $0x18] sm:%s292] %v313
                  %v315 = vld [vmem:[%s299 + $0x38] sm:%s292]
                  %316 = vst [vmem:[%s300 + $0x1c] sm:%s292] %v315
                  %v317 = vld [vmem:[%s299 + $0x40] sm:%s292]
                  %318 = vst [vmem:[%s300 + $0x20] sm:%s292] %v317
                  %v319 = vld [vmem:[%s299 + $0x48] sm:%s292]
                  %320 = vst [vmem:[%s300 + $0x24] sm:%s292] %v319
                  %v321 = vld [vmem:[%s299 + $0x50] sm:%s292]
                  %322 = vst [vmem:[%s300 + $0x28] sm:%s292] %v321
                  %v323 = vld [vmem:[%s299 + $0x58] sm:%s292]
                  %324 = vst [vmem:[%s300 + $0x2c] sm:%s292] %v323
                  %v325 = vld [vmem:[%s299 + $0x60] sm:%s292]
                  %326 = vst [vmem:[%s300 + $0x30] sm:%s292] %v325
                  %v327 = vld [vmem:[%s299 + $0x68] sm:%s292]
                  %328 = vst [vmem:[%s300 + $0x34] sm:%s292] %v327
                  %v329 = vld [vmem:[%s299 + $0x70] sm:%s292]
                  %330 = vst [vmem:[%s300 + $0x38] sm:%s292] %v329
                  %v331 = vld [vmem:[%s299 + $0x78] sm:%s292]
                  %332 = vst [vmem:[%s300 + $0x3c] sm:%s292] %v331
                $region59: #{tpu_custom_call.1} parent=46 // loop_footer
                  %s298 = sadd.s32 1, %s294
                $region60: #{tpu_custom_call.1} parent=46 // loop_footer_branch
                  %293 = sbr.rel target = $region56
                $region61: #{tpu_custom_call.1} parent=46 // loop_exit
                  _
              $region47: #{tpu_custom_call.1} parent=31 // pred_fallthru
                _
            $region32: #{tpu_custom_call.1} parent=27 // pred_fallthru
              _
            // Predicated region
            $region33: #{tpu_custom_call.1} parent=27 // pred_check
              _
            $region34: #{tpu_custom_call.1} parent=27 // pred_check_branch
              %238 = sbr.rel (0) target = $region36
            $region35: #{tpu_custom_call.1} parent=27 // pred_region
              %s240 = ssub.s32 16, 1
              loop: start=0, step=1, limit=1
              $region37: #{tpu_custom_call.1} parent=35 // loop_pre_header
                _
              $region38: #{tpu_custom_call.1} parent=35 // loop_header
                %s242 = sphi 0, %s246
                %p243 = scmp.ge.s32.totalorder %s242, 1
                %s247 = sphi %s232, %s232
                %s248 = sphi %s225, %s225
              $region39: #{tpu_custom_call.1} parent=35 // loop_header_branch
                %245 = sbr.rel (%p243) target = $region43
              $region40: #{tpu_custom_call.1} parent=35 // loop_body
                %v249 = vld [vmem:[%s247] sm:%s240]
                %250 = vst [vmem:[%s248] sm:%s240] %v249
                %v251 = vld [vmem:[%s247 + $0x8] sm:%s240]
                %252 = vst [vmem:[%s248 + $0x4] sm:%s240] %v251
                %v253 = vld [vmem:[%s247 + $0x10] sm:%s240]
                %254 = vst [vmem:[%s248 + $0x8] sm:%s240] %v253
                %v255 = vld [vmem:[%s247 + $0x18] sm:%s240]
                %256 = vst [vmem:[%s248 + $0xc] sm:%s240] %v255
                %v257 = vld [vmem:[%s247 + $0x20] sm:%s240]
                %258 = vst [vmem:[%s248 + $0x10] sm:%s240] %v257
                %v259 = vld [vmem:[%s247 + $0x28] sm:%s240]
                %260 = vst [vmem:[%s248 + $0x14] sm:%s240] %v259
                %v261 = vld [vmem:[%s247 + $0x30] sm:%s240]
                %262 = vst [vmem:[%s248 + $0x18] sm:%s240] %v261
                %v263 = vld [vmem:[%s247 + $0x38] sm:%s240]
                %264 = vst [vmem:[%s248 + $0x1c] sm:%s240] %v263
                %v265 = vld [vmem:[%s247 + $0x40] sm:%s240]
                %266 = vst [vmem:[%s248 + $0x20] sm:%s240] %v265
                %v267 = vld [vmem:[%s247 + $0x48] sm:%s240]
                %268 = vst [vmem:[%s248 + $0x24] sm:%s240] %v267
                %v269 = vld [vmem:[%s247 + $0x50] sm:%s240]
                %270 = vst [vmem:[%s248 + $0x28] sm:%s240] %v269
                %v271 = vld [vmem:[%s247 + $0x58] sm:%s240]
                %272 = vst [vmem:[%s248 + $0x2c] sm:%s240] %v271
                %v273 = vld [vmem:[%s247 + $0x60] sm:%s240]
                %274 = vst [vmem:[%s248 + $0x30] sm:%s240] %v273
                %v275 = vld [vmem:[%s247 + $0x68] sm:%s240]
                %276 = vst [vmem:[%s248 + $0x34] sm:%s240] %v275
                %v277 = vld [vmem:[%s247 + $0x70] sm:%s240]
                %278 = vst [vmem:[%s248 + $0x38] sm:%s240] %v277
                %v279 = vld [vmem:[%s247 + $0x78] sm:%s240]
                %280 = vst [vmem:[%s248 + $0x3c] sm:%s240] %v279
              $region41: #{tpu_custom_call.1} parent=35 // loop_footer
                %s246 = sadd.s32 1, %s242
              $region42: #{tpu_custom_call.1} parent=35 // loop_footer_branch
                %241 = sbr.rel target = $region38
              $region43: #{tpu_custom_call.1} parent=35 // loop_exit
                _
            $region36: #{tpu_custom_call.1} parent=27 // pred_fallthru
              _
          $region28: #{tpu_custom_call.1} parent=23 // pred_fallthru
            _
          %333 = vnop
        $region24: #{tpu_custom_call.1} parent=19 // pred_fallthru
          _
        // Predicated region
        $region62: #{tpu_custom_call.1} parent=19 // pred_check
          %p334 = pneg %p86
        $region63: #{tpu_custom_call.1} parent=19 // pred_check_branch
          %336 = sbr.rel (%p334) target = $region65
        $region64: #{tpu_custom_call.1} parent=19 // pred_region
          %s337 = smul.u32 16, %s24
          %p338 = scmp.lt.s32.totalorder %s22, 1
          %s339 = scalar_select %p338, %s22, 1
          %p340 = scmp.lt.s32.totalorder %s337, 31
          %s341 = scalar_select %p340, %s337, 31
          %s342 = smul.addr %s339, 32
          %s343 = sadd.s32 %s341, %s342
          %s344 = smul.addr %s343, 4
          %s345 = scalar_lea.vmem %s1, %s344
          %s346 = smul.u32 16, %s24
        $region65: #{tpu_custom_call.1} parent=19 // pred_fallthru
          _
        // Predicated region
        $region66: #{tpu_custom_call.1} parent=19 // pred_check
          %p347 = pneg %p114
        $region67: #{tpu_custom_call.1} parent=19 // pred_check_branch
          %349 = sbr.rel (%p347) target = $region69
        $region68: #{tpu_custom_call.1} parent=19 // pred_region
          %s350 = sand.u32 %s104, 1
          %s351 = sand.u32 %s104, 1
          %s352 = smul.addr %s351, 16
          %s353 = scalar_lea.vmem [#allocation7], %s352
          %s354 = smul.addr %s22, 8
          %s355 = sadd.s32 %s23, %s354
          %s356 = smul.addr %s355, 4
          %s357 = scalar_lea.vmem %s2, %s356
          // Predicated region
          $region70: #{tpu_custom_call.1} parent=68 // pred_check
            _
          $region71: #{tpu_custom_call.1} parent=68 // pred_check_branch
            %359 = sbr.rel (0) target = $region73
          $region72: #{tpu_custom_call.1} parent=68 // pred_region
            // Predicated region
            $region74: #{tpu_custom_call.1} parent=72 // pred_check
              _
            $region75: #{tpu_custom_call.1} parent=72 // pred_check_branch
              %361 = sbr.rel target = $region77
            $region76: #{tpu_custom_call.1} parent=72 // pred_region
              // Predicated region
              $region89: #{tpu_custom_call.1} parent=76 // pred_check
                _
              $region90: #{tpu_custom_call.1} parent=76 // pred_check_branch
                %383 = sbr.rel (0) target = $region92
              $region91: #{tpu_custom_call.1} parent=76 // pred_region
                loop: start=0, step=1, limit=1
                $region93: #{tpu_custom_call.1} parent=91 // loop_pre_header
                  _
                $region94: #{tpu_custom_call.1} parent=91 // loop_header
                  %s385 = sphi 0, %s389
                  %p386 = scmp.ge.s32.totalorder %s385, 1
                  %s390 = sphi %s357, %s357
                  %s391 = sphi %s353, %s353
                $region95: #{tpu_custom_call.1} parent=91 // loop_header_branch
                  %388 = sbr.rel (%p386) target = $region99
                $region96: #{tpu_custom_call.1} parent=91 // loop_body
                  _
                $region97: #{tpu_custom_call.1} parent=91 // loop_footer
                  %s389 = sadd.s32 1, %s385
                $region98: #{tpu_custom_call.1} parent=91 // loop_footer_branch
                  %384 = sbr.rel target = $region94
                $region99: #{tpu_custom_call.1} parent=91 // loop_exit
                  _
                %s393 = ssub.s32 16, 1
                loop: start=0, step=1, limit=1
                $region100: #{tpu_custom_call.1} parent=91 // loop_pre_header
                  _
                $region101: #{tpu_custom_call.1} parent=91 // loop_header
                  %s395 = sphi 0, %s399
                  %p396 = scmp.ge.s32.totalorder %s395, 1
                  %s400 = sphi %s357, %s357
                  %s401 = sphi %s353, %s353
                $region102: #{tpu_custom_call.1} parent=91 // loop_header_branch
                  %398 = sbr.rel (%p396) target = $region106
                $region103: #{tpu_custom_call.1} parent=91 // loop_body
                  %v402 = vld [vmem:[%s400] sm:%s393]
                  %403 = vst [vmem:[%s401] sm:%s393] %v402
                  %v404 = vld [vmem:[%s400 + $0x8] sm:%s393]
                  %405 = vst [vmem:[%s401 + $0x4] sm:%s393] %v404
                  %v406 = vld [vmem:[%s400 + $0x10] sm:%s393]
                  %407 = vst [vmem:[%s401 + $0x8] sm:%s393] %v406
                  %v408 = vld [vmem:[%s400 + $0x18] sm:%s393]
                  %409 = vst [vmem:[%s401 + $0xc] sm:%s393] %v408
                $region104: #{tpu_custom_call.1} parent=91 // loop_footer
                  %s399 = sadd.s32 1, %s395
                $region105: #{tpu_custom_call.1} parent=91 // loop_footer_branch
                  %394 = sbr.rel target = $region101
                $region106: #{tpu_custom_call.1} parent=91 // loop_exit
                  _
              $region92: #{tpu_custom_call.1} parent=76 // pred_fallthru
                _
            $region77: #{tpu_custom_call.1} parent=72 // pred_fallthru
              _
            // Predicated region
            $region78: #{tpu_custom_call.1} parent=72 // pred_check
              _
            $region79: #{tpu_custom_call.1} parent=72 // pred_check_branch
              %363 = sbr.rel (0) target = $region81
            $region80: #{tpu_custom_call.1} parent=72 // pred_region
              %s365 = ssub.s32 16, 1
              loop: start=0, step=1, limit=1
              $region82: #{tpu_custom_call.1} parent=80 // loop_pre_header
                _
              $region83: #{tpu_custom_call.1} parent=80 // loop_header
                %s367 = sphi 0, %s371
                %p368 = scmp.ge.s32.totalorder %s367, 1
                %s372 = sphi %s357, %s357
                %s373 = sphi %s353, %s353
              $region84: #{tpu_custom_call.1} parent=80 // loop_header_branch
                %370 = sbr.rel (%p368) target = $region88
              $region85: #{tpu_custom_call.1} parent=80 // loop_body
                %v374 = vld [vmem:[%s372] sm:%s365]
                %375 = vst [vmem:[%s373] sm:%s365] %v374
                %v376 = vld [vmem:[%s372 + $0x8] sm:%s365]
                %377 = vst [vmem:[%s373 + $0x4] sm:%s365] %v376
                %v378 = vld [vmem:[%s372 + $0x10] sm:%s365]
                %379 = vst [vmem:[%s373 + $0x8] sm:%s365] %v378
                %v380 = vld [vmem:[%s372 + $0x18] sm:%s365]
                %381 = vst [vmem:[%s373 + $0xc] sm:%s365] %v380
              $region86: #{tpu_custom_call.1} parent=80 // loop_footer
                %s371 = sadd.s32 1, %s367
              $region87: #{tpu_custom_call.1} parent=80 // loop_footer_branch
                %366 = sbr.rel target = $region83
              $region88: #{tpu_custom_call.1} parent=80 // loop_exit
                _
            $region81: #{tpu_custom_call.1} parent=72 // pred_fallthru
              _
          $region73: #{tpu_custom_call.1} parent=68 // pred_fallthru
            _
          %410 = vnop
        $region69: #{tpu_custom_call.1} parent=19 // pred_fallthru
          _
        // Predicated region
        $region107: #{tpu_custom_call.1} parent=19 // pred_check
          %p411 = pneg %p142
        $region108: #{tpu_custom_call.1} parent=19 // pred_check_branch
          %413 = sbr.rel (%p411) target = $region110
        $region109: #{tpu_custom_call.1} parent=19 // pred_region
          %s414 = smul.u32 16, %s24
          %p415 = scmp.lt.s32.totalorder %s22, 1
          %s416 = scalar_select %p415, %s22, 1
          %p417 = scmp.lt.s32.totalorder %s414, 31
          %s418 = scalar_select %p417, %s414, 31
          %s419 = smul.addr %s416, 32
          %s420 = sadd.s32 %s418, %s419
          %s421 = smul.addr %s420, 8
          %s422 = scalar_lea.vmem %s3, %s421
          %s423 = smul.u32 16, %s24
        $region110: #{tpu_custom_call.1} parent=19 // pred_fallthru
          _
      $region20: #{tpu_custom_call.1} parent=5 // pred_fallthru
        _
      %p424 = scmp.le.s32.totalorder 1, %s15
      %p425 = scmp.lt.s32.totalorder %s15, 9
      %p426 = pnand %p424, %p425
      %p427 = pneg %p426
      // Predicated region
      $region111: #{tpu_custom_call.1} parent=5 // pred_check
        _
      $region112: #{tpu_custom_call.1} parent=5 // pred_check_branch
        %429 = sbr.rel (%p426) target = $region114
      $region113: #{tpu_custom_call.1} parent=5 // pred_region
        %s430 = ssub.s32 %s15, 1
        %s431 = sand.u32 %s51, 1
        %s432 = sand.u32 %s51, 1
        %s433 = smul.addr %s432, 64
        %s434 = scalar_lea.vmem [#allocation6], %s433
        // Predicated region
        $region115: #{tpu_custom_call.1} parent=113 // pred_check
          %p435 = pneg %p64
        $region116: #{tpu_custom_call.1} parent=113 // pred_check_branch
          %437 = sbr.rel (%p435) target = $region118
        $region117: #{tpu_custom_call.1} parent=113 // pred_region
          _
        $region118: #{tpu_custom_call.1} parent=113 // pred_fallthru
          _
        %s438 = sand.u32 %s107, 1
        %s439 = sand.u32 %s107, 1
        %s440 = smul.addr %s439, 16
        %s441 = scalar_lea.vmem [#allocation7], %s440
        // Predicated region
        $region119: #{tpu_custom_call.1} parent=113 // pred_check
          %p442 = pneg %p120
        $region120: #{tpu_custom_call.1} parent=113 // pred_check_branch
          %444 = sbr.rel (%p442) target = $region122
        $region121: #{tpu_custom_call.1} parent=113 // pred_region
          _
        $region122: #{tpu_custom_call.1} parent=113 // pred_fallthru
          _
        %s445 = sand.u32 %s51, 1
        %s446 = sand.u32 %s51, 1
        %s447 = smul.addr %s446, 64
        %s448 = scalar_lea.vmem [#allocation6], %s447
        %p449 = pneg %p64
        %p450 = pneg %p61
        %s451 = smul.u32 16, %s27
        %p452 = scmp.lt.s32.totalorder %s25, 1
        %s453 = scalar_select %p452, %s25, 1
        %p454 = scmp.lt.s32.totalorder %s451, 31
        %s455 = scalar_select %p454, %s451, 31
        %s456 = smul.addr %s453, 32
        %s457 = sadd.s32 %s455, %s456
        %s458 = smul.addr %s457, 4
        %s459 = scalar_lea.vmem %s1, %s458
        %p460 = pneg %p92
        %p461 = pneg %p89
        %s462 = sand.u32 %s107, 1
        %s463 = sand.u32 %s107, 1
        %s464 = smul.addr %s463, 16
        %s465 = scalar_lea.vmem [#allocation7], %s464
        %p466 = pneg %p120
        %p467 = pneg %p117
        %s468 = smul.u32 16, %s27
        %p469 = scmp.lt.s32.totalorder %s25, 1
        %s470 = scalar_select %p469, %s25, 1
        %p471 = scmp.lt.s32.totalorder %s468, 31
        %s472 = scalar_select %p471, %s468, 31
        %s473 = smul.addr %s470, 32
        %s474 = sadd.s32 %s472, %s473
        %s475 = smul.addr %s474, 8
        %s476 = scalar_lea.vmem %s3, %s475
        %p477 = pneg %p148
        %p478 = pneg %p145
        %p479 = pneg %p169
        %p480 = pneg %p166
        %p481 = pneg %p197
        %p482 = pneg %p194
        %s483 = sand.u32 %s184, 1
        %s484 = scalar_lea.sflag [#allocation9], %s483
        %s485 = sand.u32 %s184, 1
        %s486 = scalar_lea.vmem [#allocation8], %s485
        %s487 = smul.u32 16, %s27
        %s488 = smul.u32 16, %s27
        %p489 = scmp.lt.s32.totalorder %s25, 1
        %s490 = scalar_select %p489, %s25, 1
        %p491 = scmp.lt.s32.totalorder %s488, 31
        %s492 = scalar_select %p491, %s488, 31
        %s493 = smul.addr %s490, 32
        %s494 = sadd.s32 %s492, %s493
        %s495 = smul.addr %s494, 4
        %s496 = scalar_lea.vmem %s1, %s495
        %s497 = smul.u32 16, %s27
        %s498 = smul.u32 16, %s27
        %p499 = scmp.lt.s32.totalorder %s25, 1
        %s500 = scalar_select %p499, %s25, 1
        %p501 = scmp.lt.s32.totalorder %s498, 31
        %s502 = scalar_select %p501, %s498, 31
        %s503 = smul.addr %s500, 32
        %s504 = sadd.s32 %s502, %s503
        %s505 = smul.addr %s504, 8
        %s506 = scalar_lea.vmem %s3, %s505
        %s507 = smul.u32 16, %s27
        %p509 = scmp.eq.s32.totalorder %s27, 0
        // Predicated region
        $region123: #{tpu_custom_call.1} parent=113 // pred_check
          %p510 = pneg %p509
        $region124: #{tpu_custom_call.1} parent=113 // pred_check_branch
          %512 = sbr.rel (%p510) target = $region126
        $region125: #{tpu_custom_call.1} parent=113 // pred_region
          %513 = vst [vmem:[#allocation2] sm:$0x1] 0.0
          %514 = vst [vmem:[#allocation3] sm:$0x1] 0.0
          %515 = vst [vmem:[#allocation4] sm:$0x1] 0.0
        $region126: #{tpu_custom_call.1} parent=113 // pred_fallthru
          _
        %v516 = vld [vmem:[%s434] sm:$0xf]
        %v517 = vld [vmem:[%s434 + $0x4] sm:$0xf]
        %v518 = vld [vmem:[%s434 + $0x8] sm:$0xf]
        %v519 = vld [vmem:[%s434 + $0xc] sm:$0xf]
        %v520 = vld [vmem:[%s434 + $0x10] sm:$0xf]
        %v521 = vld [vmem:[%s434 + $0x14] sm:$0xf]
        %v522 = vld [vmem:[%s434 + $0x18] sm:$0xf]
        %v523 = vld [vmem:[%s434 + $0x1c] sm:$0xf]
        %v524 = vld [vmem:[%s434 + $0x20] sm:$0xf]
        %v525 = vld [vmem:[%s434 + $0x24] sm:$0xf]
        %v526 = vld [vmem:[%s434 + $0x28] sm:$0xf]
        %v527 = vld [vmem:[%s434 + $0x2c] sm:$0xf]
        %v528 = vld [vmem:[%s434 + $0x30] sm:$0xf]
        %v529 = vld [vmem:[%s434 + $0x34] sm:$0xf]
        %v530 = vld [vmem:[%s434 + $0x38] sm:$0xf]
        %v531 = vld [vmem:[%s434 + $0x3c] sm:$0xf]
        %v532 = vunpack.c.l.bf16 %v516
        %v533 = vunpack.c.l.bf16 %v517
        %v534 = vunpack.c.l.bf16 %v518
        %v535 = vunpack.c.l.bf16 %v519
        %v536 = vunpack.c.l.bf16 %v520
        %v537 = vunpack.c.l.bf16 %v521
        %v538 = vunpack.c.l.bf16 %v522
        %v539 = vunpack.c.l.bf16 %v523
        %v540 = vunpack.c.l.bf16 %v524
        %v541 = vunpack.c.l.bf16 %v525
        %v542 = vunpack.c.l.bf16 %v526
        %v543 = vunpack.c.l.bf16 %v527
        %v544 = vunpack.c.l.bf16 %v528
        %v545 = vunpack.c.l.bf16 %v529
        %v546 = vunpack.c.l.bf16 %v530
        %v547 = vunpack.c.l.bf16 %v531
        %v548 = vld [vmem:[%s496] sm:$0xf]
        %v549 = vld [vmem:[%s496 + $0x4] sm:$0xf]
        %v550 = vld [vmem:[%s496 + $0x8] sm:$0xf]
        %v551 = vld [vmem:[%s496 + $0xc] sm:$0xf]
        %v552 = vld [vmem:[%s496 + $0x10] sm:$0xf]
        %v553 = vld [vmem:[%s496 + $0x14] sm:$0xf]
        %v554 = vld [vmem:[%s496 + $0x18] sm:$0xf]
        %v555 = vld [vmem:[%s496 + $0x1c] sm:$0xf]
        %v556 = vld [vmem:[%s496 + $0x20] sm:$0xf]
        %v557 = vld [vmem:[%s496 + $0x24] sm:$0xf]
        %v558 = vld [vmem:[%s496 + $0x28] sm:$0xf]
        %v559 = vld [vmem:[%s496 + $0x2c] sm:$0xf]
        %v560 = vld [vmem:[%s496 + $0x30] sm:$0xf]
        %v561 = vld [vmem:[%s496 + $0x34] sm:$0xf]
        %v562 = vld [vmem:[%s496 + $0x38] sm:$0xf]
        %v563 = vld [vmem:[%s496 + $0x3c] sm:$0xf]
        %v564 = vld [vmem:[%s441] sm:$0xf]
        %v565 = vld [vmem:[%s441 + $0x4] sm:$0xf]
        %v566 = vld [vmem:[%s441 + $0x8] sm:$0xf]
        %v567 = vld [vmem:[%s441 + $0xc] sm:$0xf]
        %v584 = vunpack.c.l.b16 %v548
        %v585 = vunpack.c.l.b16 %v549
        %v586 = vunpack.c.l.b16 %v550
        %v587 = vunpack.c.l.b16 %v551
        %v588 = vunpack.c.l.b16 %v552
        %v589 = vunpack.c.l.b16 %v553
        %v590 = vunpack.c.l.b16 %v554
        %v591 = vunpack.c.l.b16 %v555
        %v592 = vunpack.c.l.b16 %v556
        %v593 = vunpack.c.l.b16 %v557
        %v594 = vunpack.c.l.b16 %v558
        %v595 = vunpack.c.l.b16 %v559
        %v596 = vunpack.c.l.b16 %v560
        %v597 = vunpack.c.l.b16 %v561
        %v598 = vunpack.c.l.b16 %v562
        %v599 = vunpack.c.l.b16 %v563
        %v600 = vpack.c.b16 %v585, %v584
        %v601 = vpack.c.b16 %v587, %v586
        %v602 = vpack.c.b16 %v589, %v588
        %v603 = vpack.c.b16 %v591, %v590
        %v604 = vpack.c.b16 %v593, %v592
        %v605 = vpack.c.b16 %v595, %v594
        %v606 = vpack.c.b16 %v597, %v596
        %v607 = vpack.c.b16 %v599, %v598
        %v612 = vunpack.c.l.b16 %v564
        %v613 = vunpack.c.l.b16 %v565
        %v614 = vunpack.c.l.b16 %v566
        %v615 = vunpack.c.l.b16 %v567
        %v616 = vpack.c.b16 %v613, %v612
        %v617 = vpack.c.b16 %v615, %v614
        %vm620 = vcmask 261120
        %v622 = vsel %vm620, %v600, 0
        %v625 = vsel %vm620, %v601, 0
        %v628 = vsel %vm620, %v602, 0
        %v631 = vsel %vm620, %v603, 0
        %v634 = vsel %vm620, %v604, 0
        %v637 = vsel %vm620, %v605, 0
        %v640 = vsel %vm620, %v606, 0
        %v643 = vsel %vm620, %v607, 0
        %645 = vmatpush.bf16.msra.mxu0 0
        %646 = vmatpush.bf16.msra.mxu0 0
        %647 = vmatpush.bf16.msra.mxu0 0
        %648 = vmatpush.bf16.msra.mxu0 0
        %649 = vmatpush.bf16.msra.mxu0 0
        %650 = vmatpush.bf16.msra.mxu0 0
        %651 = vmatpush.bf16.msra.mxu0 %v617
        %652 = vmatpush.bf16.msra.mxu0 %v616
        %653 = vmatmul.bf16.gmra.mxu0 %v622
        %v654 = vpop.f32.mrf.mxu0
        %v655 = vadd.f32 0.0, %v654
        %v656 = vpop.f32.mrf.mxu0
        %v657 = vadd.f32 0.0, %v656
        %658 = vmatmul.bf16.gmra.mxu0 %v625
        %v659 = vpop.f32.mrf.mxu0
        %v660 = vadd.f32 0.0, %v659
        %v661 = vpop.f32.mrf.mxu0
        %v662 = vadd.f32 0.0, %v661
        %663 = vmatmul.bf16.gmra.mxu0 %v628
        %v664 = vpop.f32.mrf.mxu0
        %v665 = vadd.f32 0.0, %v664
        %v666 = vpop.f32.mrf.mxu0
        %v667 = vadd.f32 0.0, %v666
        %668 = vmatmul.bf16.gmra.mxu0 %v631
        %v669 = vpop.f32.mrf.mxu0
        %v670 = vadd.f32 0.0, %v669
        %v671 = vpop.f32.mrf.mxu0
        %v672 = vadd.f32 0.0, %v671
        %673 = vmatmul.bf16.gmra.mxu0 %v634
        %v674 = vpop.f32.mrf.mxu0
        %v675 = vadd.f32 0.0, %v674
        %v676 = vpop.f32.mrf.mxu0
        %v677 = vadd.f32 0.0, %v676
        %678 = vmatmul.bf16.gmra.mxu0 %v637
        %v679 = vpop.f32.mrf.mxu0
        %v680 = vadd.f32 0.0, %v679
        %v681 = vpop.f32.mrf.mxu0
        %v682 = vadd.f32 0.0, %v681
        %683 = vmatmul.bf16.gmra.mxu0 %v640
        %v684 = vpop.f32.mrf.mxu0
        %v685 = vadd.f32 0.0, %v684
        %v686 = vpop.f32.mrf.mxu0
        %v687 = vadd.f32 0.0, %v686
        %688 = vmatmul.bf16.gmra.mxu0 %v643
        %v689 = vpop.f32.mrf.mxu0
        %v690 = vadd.f32 0.0, %v689
        %v691 = vpop.f32.mrf.mxu0
        %v692 = vadd.f32 0.0, %v691
        %693 = vdwg.mxu0
        %v694 = vld [vmem:[%s506] sm:$0xff]
        %v695 = vld [vmem:[%s506 + $0x8] sm:$0xff]
        %v696 = vld [vmem:[%s506 + $0x10] sm:$0xff]
        %v697 = vld [vmem:[%s506 + $0x18] sm:$0xff]
        %v698 = vld [vmem:[%s506 + $0x20] sm:$0xff]
        %v699 = vld [vmem:[%s506 + $0x28] sm:$0xff]
        %v700 = vld [vmem:[%s506 + $0x30] sm:$0xff]
        %v701 = vld [vmem:[%s506 + $0x38] sm:$0xff]
        %v702 = vld [vmem:[%s506 + $0x40] sm:$0xff]
        %v703 = vld [vmem:[%s506 + $0x48] sm:$0xff]
        %v704 = vld [vmem:[%s506 + $0x50] sm:$0xff]
        %v705 = vld [vmem:[%s506 + $0x58] sm:$0xff]
        %v706 = vld [vmem:[%s506 + $0x60] sm:$0xff]
        %v707 = vld [vmem:[%s506 + $0x68] sm:$0xff]
        %v708 = vld [vmem:[%s506 + $0x70] sm:$0xff]
        %v709 = vld [vmem:[%s506 + $0x78] sm:$0xff]
        %v710 = vld [vmem:[#allocation2] sm:$0x1]
        %712 = vset.pattern.permute.xlu0 0
        %713 = vperm.xlu0 %712, %v694
        %v714 = vpop.permute.xlu0 %713
        %717 = vset.pattern.permute.xlu0 0
        %718 = vperm.xlu0 %717, %v695
        %v719 = vpop.permute.xlu0 %718
        %722 = vset.pattern.permute.xlu0 0
        %723 = vperm.xlu0 %722, %v696
        %v724 = vpop.permute.xlu0 %723
        %727 = vset.pattern.permute.xlu0 0
        %728 = vperm.xlu0 %727, %v697
        %v729 = vpop.permute.xlu0 %728
        %732 = vset.pattern.permute.xlu0 0
        %733 = vperm.xlu0 %732, %v698
        %v734 = vpop.permute.xlu0 %733
        %737 = vset.pattern.permute.xlu0 0
        %738 = vperm.xlu0 %737, %v699
        %v739 = vpop.permute.xlu0 %738
        %742 = vset.pattern.permute.xlu0 0
        %743 = vperm.xlu0 %742, %v700
        %v744 = vpop.permute.xlu0 %743
        %747 = vset.pattern.permute.xlu0 0
        %748 = vperm.xlu0 %747, %v701
        %v749 = vpop.permute.xlu0 %748
        %752 = vset.pattern.permute.xlu0 0
        %753 = vperm.xlu0 %752, %v702
        %v754 = vpop.permute.xlu0 %753
        %757 = vset.pattern.permute.xlu0 0
        %758 = vperm.xlu0 %757, %v703
        %v759 = vpop.permute.xlu0 %758
        %762 = vset.pattern.permute.xlu0 0
        %763 = vperm.xlu0 %762, %v704
        %v764 = vpop.permute.xlu0 %763
        %767 = vset.pattern.permute.xlu0 0
        %768 = vperm.xlu0 %767, %v705
        %v769 = vpop.permute.xlu0 %768
        %772 = vset.pattern.permute.xlu0 0
        %773 = vperm.xlu0 %772, %v706
        %v774 = vpop.permute.xlu0 %773
        %777 = vset.pattern.permute.xlu0 0
        %778 = vperm.xlu0 %777, %v707
        %v779 = vpop.permute.xlu0 %778
        %782 = vset.pattern.permute.xlu0 0
        %783 = vperm.xlu0 %782, %v708
        %v784 = vpop.permute.xlu0 %783
        %787 = vset.pattern.permute.xlu0 0
        %788 = vperm.xlu0 %787, %v709
        %v789 = vpop.permute.xlu0 %788
        %v791 = vmul.f32 %v532, %v714
        %v792 = vmul.f32 %v533, %v719
        %v793 = vmul.f32 %v534, %v724
        %v794 = vmul.f32 %v535, %v729
        %v795 = vmul.f32 %v536, %v734
        %v796 = vmul.f32 %v537, %v739
        %v797 = vmul.f32 %v538, %v744
        %v798 = vmul.f32 %v539, %v749
        %v799 = vmul.f32 %v540, %v754
        %v800 = vmul.f32 %v541, %v759
        %v801 = vmul.f32 %v542, %v764
        %v802 = vmul.f32 %v543, %v769
        %v803 = vmul.f32 %v544, %v774
        %v804 = vmul.f32 %v545, %v779
        %v805 = vmul.f32 %v546, %v784
        %v806 = vmul.f32 %v547, %v789
        %v807 = vadd.f32 %v791, %v792
        %v808 = vadd.f32 %v807, %v793
        %v809 = vadd.f32 %v808, %v794
        %v810 = vadd.f32 %v809, %v795
        %v811 = vadd.f32 %v810, %v796
        %v812 = vadd.f32 %v811, %v797
        %v813 = vadd.f32 %v812, %v798
        %v814 = vadd.f32 %v813, %v799
        %v815 = vadd.f32 %v814, %v800
        %v816 = vadd.f32 %v815, %v801
        %v817 = vadd.f32 %v816, %v802
        %v818 = vadd.f32 %v817, %v803
        %v819 = vadd.f32 %v818, %v804
        %v820 = vadd.f32 %v819, %v805
        %v821 = vadd.f32 %v820, %v806
        %v822 = vrot.slane %v821, 4
        %v823 = vadd.f32 %v821, %v822
        %v824 = vrot.slane %v823, 2
        %v825 = vadd.f32 %v823, %v824
        %v826 = vrot.slane %v825, 1
        %v827 = vadd.f32 %v825, %v826
        %v828 = vadd.f32 %v710, %v827
        %829 = vst [vmem:[#allocation2] sm:$0x1] %v828
        %v830 = vld [vmem:[#allocation3] sm:$0x1]
        %v831 = vmul.f32 %v532, %v655
        %v832 = vmul.f32 %v533, %v657
        %v833 = vmul.f32 %v534, %v660
        %v834 = vmul.f32 %v535, %v662
        %v835 = vmul.f32 %v536, %v665
        %v836 = vmul.f32 %v537, %v667
        %v837 = vmul.f32 %v538, %v670
        %v838 = vmul.f32 %v539, %v672
        %v839 = vmul.f32 %v540, %v675
        %v840 = vmul.f32 %v541, %v677
        %v841 = vmul.f32 %v542, %v680
        %v842 = vmul.f32 %v543, %v682
        %v843 = vmul.f32 %v544, %v685
        %v844 = vmul.f32 %v545, %v687
        %v845 = vmul.f32 %v546, %v690
        %v846 = vmul.f32 %v547, %v692
        %v847 = vadd.f32 %v831, %v832
        %v848 = vadd.f32 %v847, %v833
        %v849 = vadd.f32 %v848, %v834
        %v850 = vadd.f32 %v849, %v835
        %v851 = vadd.f32 %v850, %v836
        %v852 = vadd.f32 %v851, %v837
        %v853 = vadd.f32 %v852, %v838
        %v854 = vadd.f32 %v853, %v839
        %v855 = vadd.f32 %v854, %v840
        %v856 = vadd.f32 %v855, %v841
        %v857 = vadd.f32 %v856, %v842
        %v858 = vadd.f32 %v857, %v843
        %v859 = vadd.f32 %v858, %v844
        %v860 = vadd.f32 %v859, %v845
        %v861 = vadd.f32 %v860, %v846
        %v862 = vrot.slane %v861, 4
        %v863 = vadd.f32 %v861, %v862
        %v864 = vrot.slane %v863, 2
        %v865 = vadd.f32 %v863, %v864
        %v866 = vrot.slane %v865, 1
        %v867 = vadd.f32 %v865, %v866
        %v868 = vadd.f32 %v830, %v867
        %869 = vst [vmem:[#allocation3] sm:$0x1] %v868
        %v870 = vld [vmem:[#allocation4] sm:$0x1]
        %v871 = vadd.f32 %v532, %v533
        %v872 = vadd.f32 %v871, %v534
        %v873 = vadd.f32 %v872, %v535
        %v874 = vadd.f32 %v873, %v536
        %v875 = vadd.f32 %v874, %v537
        %v876 = vadd.f32 %v875, %v538
        %v877 = vadd.f32 %v876, %v539
        %v878 = vadd.f32 %v877, %v540
        %v879 = vadd.f32 %v878, %v541
        %v880 = vadd.f32 %v879, %v542
        %v881 = vadd.f32 %v880, %v543
        %v882 = vadd.f32 %v881, %v544
        %v883 = vadd.f32 %v882, %v545
        %v884 = vadd.f32 %v883, %v546
        %v885 = vadd.f32 %v884, %v547
        %v886 = vrot.slane %v885, 4
        %v887 = vadd.f32 %v885, %v886
        %v888 = vrot.slane %v887, 2
        %v889 = vadd.f32 %v887, %v888
        %v890 = vrot.slane %v889, 1
        %v891 = vadd.f32 %v889, %v890
        %v892 = vadd.f32 %v870, %v891
        %893 = vst [vmem:[#allocation4] sm:$0x1] %v892
        %p894 = scmp.eq.s32.totalorder %s26, %s27
        // Predicated region
        $region127: #{tpu_custom_call.1} parent=113 // pred_check
          %p895 = pneg %p894
        $region128: #{tpu_custom_call.1} parent=113 // pred_check_branch
          %897 = sbr.rel (%p895) target = $region130
        $region129: #{tpu_custom_call.1} parent=113 // pred_region
          %v898 = vlaneseq
          %v899 = vshrl.u32 %v898, 7
          %v900 = vadd.s32 %v899, 8
          %v901 = vadd.s32 %v899, 16
          %v902 = vadd.s32 %v899, 24
          %v903 = vadd.s32 %v899, 32
          %v904 = vadd.s32 %v899, 40
          %v905 = vadd.s32 %v899, 48
          %v906 = vadd.s32 %v899, 56
          %v907 = vadd.s32 %v899, 64
          %v908 = vadd.s32 %v899, 72
          %v909 = vadd.s32 %v899, 80
          %v910 = vadd.s32 %v899, 88
          %v911 = vadd.s32 %v899, 96
          %v912 = vadd.s32 %v899, 104
          %v913 = vadd.s32 %v899, 112
          %v914 = vadd.s32 %v899, 120
          %v915 = vlaneseq
          %v916 = vand.u32 %v915, 127
          %vm917 = vcmp.eq.s32.totalorder %v899, %v916
          %vm918 = vcmp.eq.s32.totalorder %v900, %v916
          %vm919 = vcmp.eq.s32.totalorder %v901, %v916
          %vm920 = vcmp.eq.s32.totalorder %v902, %v916
          %vm921 = vcmp.eq.s32.totalorder %v903, %v916
          %vm922 = vcmp.eq.s32.totalorder %v904, %v916
          %vm923 = vcmp.eq.s32.totalorder %v905, %v916
          %vm924 = vcmp.eq.s32.totalorder %v906, %v916
          %vm925 = vcmp.eq.s32.totalorder %v907, %v916
          %vm926 = vcmp.eq.s32.totalorder %v908, %v916
          %vm927 = vcmp.eq.s32.totalorder %v909, %v916
          %vm928 = vcmp.eq.s32.totalorder %v910, %v916
          %vm929 = vcmp.eq.s32.totalorder %v911, %v916
          %vm930 = vcmp.eq.s32.totalorder %v912, %v916
          %vm931 = vcmp.eq.s32.totalorder %v913, %v916
          %vm932 = vcmp.eq.s32.totalorder %v914, %v916
          %v933 = vsel %vm917, %v532, 0.0
          %v934 = vsel %vm918, %v533, 0.0
          %v935 = vsel %vm919, %v534, 0.0
          %v936 = vsel %vm920, %v535, 0.0
          %v937 = vsel %vm921, %v536, 0.0
          %v938 = vsel %vm922, %v537, 0.0
          %v939 = vsel %vm923, %v538, 0.0
          %v940 = vsel %vm924, %v539, 0.0
          %v941 = vsel %vm925, %v540, 0.0
          %v942 = vsel %vm926, %v541, 0.0
          %v943 = vsel %vm927, %v542, 0.0
          %v944 = vsel %vm928, %v543, 0.0
          %v945 = vsel %vm929, %v544, 0.0
          %v946 = vsel %vm930, %v545, 0.0
          %v947 = vsel %vm931, %v546, 0.0
          %v948 = vsel %vm932, %v547, 0.0
          %v949 = vld [vmem:[#allocation3] sm:$0x1]
          %v950 = vmul.f32 %v933, %v655
          %v951 = vmul.f32 %v934, %v657
          %v952 = vmul.f32 %v935, %v660
          %v953 = vmul.f32 %v936, %v662
          %v954 = vmul.f32 %v937, %v665
          %v955 = vmul.f32 %v938, %v667
          %v956 = vmul.f32 %v939, %v670
          %v957 = vmul.f32 %v940, %v672
          %v958 = vmul.f32 %v941, %v675
          %v959 = vmul.f32 %v942, %v677
          %v960 = vmul.f32 %v943, %v680
          %v961 = vmul.f32 %v944, %v682
          %v962 = vmul.f32 %v945, %v685
          %v963 = vmul.f32 %v946, %v687
          %v964 = vmul.f32 %v947, %v690
          %v965 = vmul.f32 %v948, %v692
          %v966 = vadd.f32 %v950, %v951
          %v967 = vadd.f32 %v966, %v952
          %v968 = vadd.f32 %v967, %v953
          %v969 = vadd.f32 %v968, %v954
          %v970 = vadd.f32 %v969, %v955
          %v971 = vadd.f32 %v970, %v956
          %v972 = vadd.f32 %v971, %v957
          %v973 = vadd.f32 %v972, %v958
          %v974 = vadd.f32 %v973, %v959
          %v975 = vadd.f32 %v974, %v960
          %v976 = vadd.f32 %v975, %v961
          %v977 = vadd.f32 %v976, %v962
          %v978 = vadd.f32 %v977, %v963
          %v979 = vadd.f32 %v978, %v964
          %v980 = vadd.f32 %v979, %v965
          %v981 = vrot.slane %v980, 4
          %v982 = vadd.f32 %v980, %v981
          %v983 = vrot.slane %v982, 2
          %v984 = vadd.f32 %v982, %v983
          %v985 = vrot.slane %v984, 1
          %v986 = vadd.f32 %v984, %v985
          %v987 = vsub.f32 %v949, %v986
          %988 = vst [vmem:[#allocation3] sm:$0x1] %v987
          %v989 = vld [vmem:[#allocation4] sm:$0x1]
          %v990 = vadd.f32 %v933, %v934
          %v991 = vadd.f32 %v990, %v935
          %v992 = vadd.f32 %v991, %v936
          %v993 = vadd.f32 %v992, %v937
          %v994 = vadd.f32 %v993, %v938
          %v995 = vadd.f32 %v994, %v939
          %v996 = vadd.f32 %v995, %v940
          %v997 = vadd.f32 %v996, %v941
          %v998 = vadd.f32 %v997, %v942
          %v999 = vadd.f32 %v998, %v943
          %v1000 = vadd.f32 %v999, %v944
          %v1001 = vadd.f32 %v1000, %v945
          %v1002 = vadd.f32 %v1001, %v946
          %v1003 = vadd.f32 %v1002, %v947
          %v1004 = vadd.f32 %v1003, %v948
          %v1005 = vrot.slane %v1004, 4
          %v1006 = vadd.f32 %v1004, %v1005
          %v1007 = vrot.slane %v1006, 2
          %v1008 = vadd.f32 %v1006, %v1007
          %v1009 = vrot.slane %v1008, 1
          %v1010 = vadd.f32 %v1008, %v1009
          %v1011 = vsub.f32 %v989, %v1010
          %1012 = vst [vmem:[#allocation4] sm:$0x1] %v1011
        $region130: #{tpu_custom_call.1} parent=113 // pred_fallthru
          _
        %p1013 = scmp.eq.s32.totalorder %s27, 1
        // Predicated region
        $region131: #{tpu_custom_call.1} parent=113 // pred_check
          %p1014 = pneg %p1013
        $region132: #{tpu_custom_call.1} parent=113 // pred_check_branch
          %1016 = sbr.rel (%p1014) target = $region134
        $region133: #{tpu_custom_call.1} parent=113 // pred_region
          %s1017 = sld [smem:[#allocation5]]
          %v1018 = vld [vmem:[#allocation2] sm:$0x1]
          %v1019 = vstv %s1017
          %v1020 = vadd.f32 %v1018, %v1019
          %v1021 = vsub.f32 0.0, %v1020
          %v1022 = vmul.f32 %v1021, 1.442695
          %v1023 = vpow.pop %v1022
          %v1024 = vadd.f32 %v1023, 1.0
          %v1025 = vrcp.pop %v1024
          %v1026 = vmul.f32 %v1024, %v1025
          %v1027 = vsub.f32 1.0, %v1026
          %v1028 = vmul.f32 %v1025, %v1027
          %v1029 = vadd.f32 %v1025, %v1028
          %vm1030 = vweird.f32 %v1024
          %vm1031 = vweird.f32 %v1025
          %vm1032 = vmor %vm1030, %vm1031
          %v1033 = vsel %vm1032, %v1025, %v1029
          %v1034 = vand.u32 2147483647, %v1024
          %vm1035 = vcmp.eq.f32.partialorder %v1034, 8.507059e+37
          %v1036 = vand.u32 %v1024, 2147483648
          %v1037 = vor.u32 1.1754944e-38, %v1036
          %v1038 = vsel %vm1035, %v1037, %v1033
          %v1039 = vmul.f32 1.0, %v1038
          %v1040 = vld [vmem:[#allocation3] sm:$0x1]
          %v1041 = vld [vmem:[#allocation4] sm:$0x1]
          %v1042 = vmax.f32 %v1041, 1.0
          %v1043 = vrcp.pop %v1042
          %v1044 = vmul.f32 %v1042, %v1043
          %v1045 = vsub.f32 1.0, %v1044
          %v1046 = vmul.f32 %v1043, %v1045
          %v1047 = vadd.f32 %v1043, %v1046
          %vm1048 = vweird.f32 %v1042
          %vm1049 = vweird.f32 %v1043
          %vm1050 = vmor %vm1048, %vm1049
          %v1051 = vsel %vm1050, %v1043, %v1047
          %v1052 = vand.u32 2147483647, %v1042
          %vm1053 = vcmp.eq.f32.partialorder %v1052, 8.507059e+37
          %v1054 = vand.u32 %v1042, 2147483648
          %v1055 = vor.u32 1.1754944e-38, %v1054
          %v1056 = vsel %vm1053, %v1055, %v1051
          %v1057 = vmul.f32 %v1040, %v1056
          %v1058 = vadd.f32 %v1057, 1e-08
          %v1059 = vrcp.pop %v1058
          %v1060 = vmul.f32 %v1058, %v1059
          %v1061 = vsub.f32 1.0, %v1060
          %v1062 = vmul.f32 %v1059, %v1061
          %v1063 = vadd.f32 %v1059, %v1062
          %vm1064 = vweird.f32 %v1058
          %vm1065 = vweird.f32 %v1059
          %vm1066 = vmor %vm1064, %vm1065
          %v1067 = vsel %vm1066, %v1059, %v1063
          %v1068 = vand.u32 2147483647, %v1058
          %vm1069 = vcmp.eq.f32.partialorder %v1068, 8.507059e+37
          %v1070 = vand.u32 %v1058, 2147483648
          %v1071 = vor.u32 1.1754944e-38, %v1070
          %v1072 = vsel %vm1069, %v1071, %v1067
          %v1073 = vmul.f32 %v1039, %v1072
          %1074 = vst [vmem:[%s486] sm:$0x1] %v1073
        $region134: #{tpu_custom_call.1} parent=113 // pred_fallthru
          _
        %s1075 = sand.u32 %s184, 1
        %s1076 = scalar_lea.sflag [#allocation9], %s1075
        %s1077 = sand.u32 %s184, 1
        %s1078 = scalar_lea.vmem [#allocation8], %s1077
        // Predicated region
        $region135: #{tpu_custom_call.1} parent=113 // pred_check
          %p1079 = pneg %p194
        $region136: #{tpu_custom_call.1} parent=113 // pred_check_branch
          %1081 = sbr.rel (%p1079) target = $region138
        $region137: #{tpu_custom_call.1} parent=113 // pred_region
          %1083 = vsyncadd %s1076, 0
          %s1084 = smul.addr %s25, 2
          %s1085 = sadd.s32 %s26, %s1084
          %s1086 = scalar_lea.hbm %s5, %s1085
          %s1088 = sshll.u32 %s1078, 4
          %s1089 = int_to_ptr.vmem [resolvable:$true] %s1088
          %s1090 = sshll.u32 %s1086, 4
          %s1091 = int_to_ptr.hbm [resolvable:$true] %s1090
          %1093 = dma.vmem_to_hbm [thread:$0]  %s1089, 16, %s1091, %s1076
        $region138: #{tpu_custom_call.1} parent=113 // pred_fallthru
          _
      $region114: #{tpu_custom_call.1} parent=5 // pred_fallthru
        _
      %p1094 = scmp.le.s32.totalorder 2, %s15
      // Predicated region
      $region139: #{tpu_custom_call.1} parent=5 // pred_check
        %p1095 = pneg %p1094
      $region140: #{tpu_custom_call.1} parent=5 // pred_check_branch
        %1097 = sbr.rel (%p1095) target = $region142
      $region141: #{tpu_custom_call.1} parent=5 // pred_region
        %s1098 = ssub.s32 %s15, 2
        // Predicated region
        $region143: #{tpu_custom_call.1} parent=141 // pred_check
          %p1099 = pneg %p200
        $region144: #{tpu_custom_call.1} parent=141 // pred_check_branch
          %1101 = sbr.rel (%p1099) target = $region146
        $region145: #{tpu_custom_call.1} parent=141 // pred_region
          %s1102 = sand.u32 %s185, 1
          %s1103 = scalar_lea.sflag [#allocation9], %s1102
          %s1104 = sand.u32 %s185, 1
          %s1105 = scalar_lea.vmem [#allocation8], %s1104
          %1107 = dma.done %s1103, 16
        $region146: #{tpu_custom_call.1} parent=141 // pred_fallthru
          _
      $region142: #{tpu_custom_call.1} parent=5 // pred_fallthru
        _
    $region6: #{tpu_custom_call.1} parent=1 // loop_footer
      %s19 = sadd.s32 1, %s15
    $region7: #{tpu_custom_call.1} parent=1 // loop_footer_branch
      %14 = sbr.rel target = $region3
    $region8: #{tpu_custom_call.1} parent=1 // loop_exit
      _
    %1108 = vsyncpa [#allocation9], 1
    %s1109 = scalar_lea.sflag [#allocation9], 1
    %1110 = vsyncpa %s1109, 1

</llo_original>
